<compile_context>
chip_gen: v5e
topology: v5e:2x2
jax: 0.10.0
libtpu: 0.0.40
codegen_flags: <defaults>
</compile_context>

<pallas_src>
import jax
import jax.numpy as jnp
from jax import lax
from jax.experimental import pallas as pl
from jax.experimental.pallas import tpu as pltpu


def _reward_kernel(x_ref, w_ref, o_ref):
    # x_ref: [TM, F], w_ref: [T, F], o_ref: [TM, T] — contract the last axes
    # (x @ w.T) directly on the MXU with f32 accumulation.
    o_ref[...] = lax.dot_general(
        x_ref[...],
        w_ref[...],
        dimension_numbers=(((1,), (1,)), ((), ())),
        preferred_element_type=jnp.float32,
    ).astype(o_ref.dtype)


def reward_multi_task(features: jax.Array, weight: jax.Array, *, block_m: int = 1024) -> jax.Array:
    """Forward pass of RewardMultiTask.

    Args:
        features: [batch_size, feature_size]
        weight:   [n_task, feature_size]  (torch.nn.Linear.weight convention)
        block_m:  batch-tile size (rows per grid step), multiple of 8.

    Returns:
        [batch_size, n_task]
    """
    assert features.shape[-1] == weight.shape[-1], (
        f"{weight.shape[-1]} : {features.shape[-1]}"
    )
    batch, feature_size = features.shape
    n_task = weight.shape[0]

    # Tile the batch axis; small batches use a single full-extent block.
    if batch <= block_m:
        tm = batch                      # full extent along batch -> always legal
    else:
        tm = block_m                    # multiple of 8 -> legal sublane tiling
    grid_m = pl.cdiv(batch, tm)

    out = pl.pallas_call(
        _reward_kernel,
        out_shape=jax.ShapeDtypeStruct((batch, n_task), features.dtype),
        grid=(grid_m,),
        in_specs=[
            # features: one batch tile per grid step (double-buffered by Pallas).
            pl.BlockSpec((tm, feature_size), lambda i: (i, 0)),
            # weight: constant block index -> fetched once, resident in VMEM.
            pl.BlockSpec((n_task, feature_size), lambda i: (0, 0)),
        ],
        out_specs=pl.BlockSpec((tm, n_task), lambda i: (i, 0)),
        compiler_params=pltpu.CompilerParams(
            dimension_semantics=("parallel",),
        ),
    )(features, weight)
    return out


if __name__ == "__main__":
    feature_size = 768
    n_task = 8

    key = jax.random.PRNGKey(0)
    k_x, k_w, k_x2 = jax.random.split(key, 3)

    # nn.Linear(feature_size, n_task, bias=False).weight has shape [n_task, feature_size]
    weight = jax.random.normal(k_w, (n_task, feature_size), dtype=jnp.float32) * 0.02

    # --- Small case (matches module defaults / tiny batch): single full-extent block.
    features_small = jax.random.normal(k_x, (2, feature_size), dtype=jnp.float32)
    out_small = jax.block_until_ready(reward_multi_task(features_small, weight))
    ref_small = features_small @ weight.T
    assert out_small.shape == (2, n_task), out_small.shape
    assert jnp.allclose(out_small, ref_small, atol=1e-4, rtol=1e-4), "small-batch mismatch"

    # --- Larger batch: exercises the tiled / pipelined path, incl. a partial last tile.
    batch_large = 2304  # not a multiple of block_m=1024 -> last grid block is partial
    features_large = jax.random.normal(k_x2, (batch_large, feature_size), dtype=jnp.float32)
    out_large = jax.block_until_ready(reward_multi_task(features_large, weight))
    ref_large = features_large @ weight.T
    assert out_large.shape == (batch_large, n_task), out_large.shape
    assert jnp.allclose(out_large, ref_large, atol=1e-4, rtol=1e-4), "tiled-batch mismatch"

    print("KERNEL_OK")
</pallas_src>

<mosaic_0001>
module attributes {stable_mosaic.version = 11 : i64} {
  func.func @_reward_kernel(%arg0: i32, %arg1: memref<2x768xf32, #tpu.memory_space<vmem>>, %arg2: memref<8x768xf32, #tpu.memory_space<vmem>>, %arg3: memref<2x8xf32, #tpu.memory_space<vmem>>) attributes {dimension_semantics = [#tpu.dimension_semantics<parallel>], iteration_bounds = array<i64: 1>, scalar_prefetch = 0 : i64, scratch_operands = 0 : i64, tpu.core_type = #tpu.core_type<tc>, window_params = [{transform_indices = @transform_0, window_bounds = array<i64: 2, 768>}, {pipeline_mode = #tpu.pipeline_mode<synchronous>, transform_indices = @transform_1, window_bounds = array<i64: 8, 768>}, {transform_indices = @transform_2, window_bounds = array<i64: 2, 8>}]} {
    %c0 = arith.constant 0 : index
    %c0_0 = arith.constant 0 : index
    %0 = vector.load %arg1[%c0, %c0_0] : memref<2x768xf32, #tpu.memory_space<vmem>>, vector<2x768xf32>
    %c0_1 = arith.constant 0 : index
    %c0_2 = arith.constant 0 : index
    %1 = vector.load %arg2[%c0_1, %c0_2] : memref<8x768xf32, #tpu.memory_space<vmem>>, vector<8x768xf32>
    %cst = arith.constant dense<0.000000e+00> : vector<2x8xf32>
    %2 = tpu.matmul %0, %1, %cst {dimension_numbers = #tpu.dot_dimension_numbers<[1], [1], [0], [0], [0, 0, 1, 0], [], []>} : vector<2x768xf32>, vector<8x768xf32>, vector<2x8xf32> -> vector<2x8xf32>
    %c0_3 = arith.constant 0 : index
    %c0_4 = arith.constant 0 : index
    %3 = vector.load %arg3[%c0_3, %c0_4] : memref<2x8xf32, #tpu.memory_space<vmem>>, vector<2x8xf32>
    tpu.vector_store %arg3[%c0_3, %c0_4], %2 {strides = array<i32>} : memref<2x8xf32, #tpu.memory_space<vmem>>, vector<2x8xf32>,
    return
  }
  func.func @transform_0(%arg0: i32) -> (i32, i32) {
    %c0_i32 = arith.constant 0 : i32
    %c0_i32_0 = arith.constant 0 : i32
    return %arg0, %c0_i32 : i32, i32
  }
  func.func @transform_1(%arg0: i32) -> (i32, i32) {
    %c0_i32 = arith.constant 0 : i32
    %c0_i32_0 = arith.constant 0 : i32
    %c0_i32_1 = arith.constant 0 : i32
    return %c0_i32, %c0_i32_0 : i32, i32
  }
  func.func @transform_2(%arg0: i32) -> (i32, i32) {
    %c0_i32 = arith.constant 0 : i32
    %c0_i32_0 = arith.constant 0 : i32
    return %arg0, %c0_i32 : i32, i32
  }
}

</mosaic_0001>

<llo_original>
// kernel: tpu_custom_call.1
$region0: #{tpu_custom_call.1}
  #allocation0 [shape = 'u32[]', space=smem, size = 0x4, offset = 0x4, fixed_abs, tag = 'smem constant byte address 0x4 - core index']
  #allocation1 [shape = 'u32[72,128]{1,0:T(1,128)}', space=vmem, size = 0x9000, scoped, tag = 'internal scratch']
  %s0 = inlined_call_operand.hbm [shape: f32[2,768], index: 0, kind: input, shape index: {}]
  %s1 = inlined_call_operand.hbm [shape: f32[8,768], index: 1, kind: input, shape index: {}]
  %s2 = inlined_call_operand.hbm [shape: f32[2,8], index: 2, kind: output, shape index: {}]
  %s3 = sld [smem:[#allocation0]]
  $region26: #{tpu_custom_call.1} parent=0
    _
  %s5 = ssub.s32 1, %s3
  %s6 = scalar_select 0, %s5, %s3
  $region1: #{tpu_custom_call.1} parent=0
    #allocation2 [shape = 'u8[6144]{0}', space=vmem, size = 0x1800, scoped, tag = 'input window, operand 0, single buffered']
    #allocation3 [shape = 's32[1]{0}', space=sflag, size = 0x4, scoped, tag = 'scoped memory for tpu_custom_call.1']
    #allocation4 [shape = 's32[1]{0}', space=sflag, size = 0x4, scoped, tag = 'scoped memory for tpu_custom_call.1']
    #allocation5 [shape = 'u8[24576]{0}', space=vmem, size = 0x6000, scoped, tag = 'input window, operand 1, single buffered']
    #allocation6 [shape = 's32[1]{0}', space=sflag, size = 0x4, scoped, tag = 'scoped memory for tpu_custom_call.1']
    #allocation7 [shape = 'u8[1024]{0}', space=vmem, size = 0x400, scoped, tag = 'output window, operand 0, single buffered']
    %7 = vsyncpa [#allocation3], 0
    %8 = vsyncpa [#allocation6], 0
    %9 = vsyncpa [#allocation4], 0
    // Predicated region
    $region2: #{tpu_custom_call.1} parent=1 // pred_check
      _
    $region3: #{tpu_custom_call.1} parent=1 // pred_check_branch
      %11 = sbr.rel (0) target = $region5
    $region4: #{tpu_custom_call.1} parent=1 // pred_region
      %13 = vsyncadd [#allocation3], 0
      %s15 = sshll.u32 %s0, 4
      %s16 = int_to_ptr.hbm [resolvable:$true] %s15
      %s17 = sshll.u32 [#allocation2], 4
      %s18 = int_to_ptr.vmem [resolvable:$true] %s17
      %20 = dma.hbm_to_vmem [thread:$0]  %s16, 192, %s18, [#allocation3]
    $region5: #{tpu_custom_call.1} parent=1 // pred_fallthru
      _
    // Predicated region
    $region6: #{tpu_custom_call.1} parent=1 // pred_check
      _
    $region7: #{tpu_custom_call.1} parent=1 // pred_check_branch
      %22 = sbr.rel (0) target = $region9
    $region8: #{tpu_custom_call.1} parent=1 // pred_region
      %24 = vsyncadd [#allocation6], 0
      %s26 = sshll.u32 %s1, 4
      %s27 = int_to_ptr.hbm [resolvable:$true] %s26
      %s28 = sshll.u32 [#allocation5], 4
      %s29 = int_to_ptr.vmem [resolvable:$true] %s28
      %31 = dma.hbm_to_vmem [thread:$0]  %s27, 768, %s29, [#allocation6]
    $region9: #{tpu_custom_call.1} parent=1 // pred_fallthru
      _
    // Predicated region
    $region10: #{tpu_custom_call.1} parent=1 // pred_check
      _
    $region11: #{tpu_custom_call.1} parent=1 // pred_check_branch
      %33 = sbr.rel (0) target = $region13
    $region12: #{tpu_custom_call.1} parent=1 // pred_region
      %35 = dma.done [#allocation3], 192
    $region13: #{tpu_custom_call.1} parent=1 // pred_fallthru
      _
    // Predicated region
    $region14: #{tpu_custom_call.1} parent=1 // pred_check
      _
    $region15: #{tpu_custom_call.1} parent=1 // pred_check_branch
      %37 = sbr.rel (0) target = $region17
    $region16: #{tpu_custom_call.1} parent=1 // pred_region
      %39 = dma.done [#allocation6], 768
    $region17: #{tpu_custom_call.1} parent=1 // pred_fallthru
      _
    %v40 = vld [vmem:[#allocation2] sm:$0xff]
    %v41 = vld [vmem:[#allocation2 + $0x8] sm:$0xf]
    %v42 = vld [vmem:[#allocation5] sm:$0xff]
    %v43 = vld [vmem:[#allocation5 + $0x8] sm:$0xff]
    %v44 = vld [vmem:[#allocation5 + $0x10] sm:$0xff]
    %v45 = vld [vmem:[#allocation5 + $0x18] sm:$0xff]
    %v46 = vld [vmem:[#allocation5 + $0x20] sm:$0xff]
    %v47 = vld [vmem:[#allocation5 + $0x28] sm:$0xff]
    %50 = vst [vmem:[#allocation1] ss:$4 sm:$0xff] %v40
    %s51 = scalar_lea.vmem [#allocation1], 32
    %52 = vst [vmem:[%s51] ss:$4 sm:$0xff] %v41
    %v53 = vld.sshfl [vmem:[#allocation1] sm:$0xff pattern:$0x73625140]
    %v54 = vld.sshfl [vmem:[#allocation1 + $0x8] sm:$0xff pattern:$0x73625140]
    %v55 = vld.sshfl [vmem:[#allocation1 + $0x10] sm:$0xff pattern:$0x73625140]
    %v56 = vld.sshfl [vmem:[#allocation1 + $0x18] sm:$0xff pattern:$0x73625140]
    %v57 = vld.sshfl [vmem:[#allocation1 + $0x20] sm:$0xff pattern:$0x73625140]
    %v58 = vld.sshfl [vmem:[#allocation1 + $0x28] sm:$0xff pattern:$0x73625140]
    %65 = vmatpush.xpose.msra.mxu0 0.0
    %66 = vmatpush.xpose.msra.mxu0 0.0
    %67 = vmatpush.xpose.msra.mxu0 0.0
    %68 = vmatpush.xpose.msra.mxu0 0.0
    %69 = vmatpush.xpose.msra.mxu0 0.0
    %70 = vmatpush.xpose.msra.mxu0 0.0
    %71 = vmatpush.xpose.msra.mxu0 0.0
    %72 = vmatpush.xpose.msra.mxu0 0.0
    %73 = vmatpush.xpose.msra.mxu0 0.0
    %74 = vmatpush.xpose.msra.mxu0 0.0
    %75 = vmatpush.xpose.msra.mxu0 0.0
    %76 = vmatpush.xpose.msra.mxu0 0.0
    %77 = vmatpush.xpose.msra.mxu0 0.0
    %78 = vmatpush.xpose.msra.mxu0 0.0
    %79 = vmatpush.xpose.msra.mxu0 0.0
    %80 = vmatpush.xpose.msra.mxu0 %v42
    %81 = vmatmul.f32.gmra.mxu0 %v53
    %v82 = vpop.f32.mrf.mxu0
    %v83 = vadd.f32 0.0, %v82
    %84 = vdwg.mxu0
    %85 = vmatpush.xpose.msra.mxu0 0.0
    %86 = vmatpush.xpose.msra.mxu0 0.0
    %87 = vmatpush.xpose.msra.mxu0 0.0
    %88 = vmatpush.xpose.msra.mxu0 0.0
    %89 = vmatpush.xpose.msra.mxu0 0.0
    %90 = vmatpush.xpose.msra.mxu0 0.0
    %91 = vmatpush.xpose.msra.mxu0 0.0
    %92 = vmatpush.xpose.msra.mxu0 0.0
    %93 = vmatpush.xpose.msra.mxu0 0.0
    %94 = vmatpush.xpose.msra.mxu0 0.0
    %95 = vmatpush.xpose.msra.mxu0 0.0
    %96 = vmatpush.xpose.msra.mxu0 0.0
    %97 = vmatpush.xpose.msra.mxu0 0.0
    %98 = vmatpush.xpose.msra.mxu0 0.0
    %99 = vmatpush.xpose.msra.mxu0 0.0
    %100 = vmatpush.xpose.msra.mxu0 %v43
    %101 = vmatmul.f32.gmra.mxu0 %v54
    %v102 = vpop.f32.mrf.mxu0
    %v103 = vadd.f32 %v83, %v102
    %104 = vdwg.mxu0
    %105 = vmatpush.xpose.msra.mxu0 0.0
    %106 = vmatpush.xpose.msra.mxu0 0.0
    %107 = vmatpush.xpose.msra.mxu0 0.0
    %108 = vmatpush.xpose.msra.mxu0 0.0
    %109 = vmatpush.xpose.msra.mxu0 0.0
    %110 = vmatpush.xpose.msra.mxu0 0.0
    %111 = vmatpush.xpose.msra.mxu0 0.0
    %112 = vmatpush.xpose.msra.mxu0 0.0
    %113 = vmatpush.xpose.msra.mxu0 0.0
    %114 = vmatpush.xpose.msra.mxu0 0.0
    %115 = vmatpush.xpose.msra.mxu0 0.0
    %116 = vmatpush.xpose.msra.mxu0 0.0
    %117 = vmatpush.xpose.msra.mxu0 0.0
    %118 = vmatpush.xpose.msra.mxu0 0.0
    %119 = vmatpush.xpose.msra.mxu0 0.0
    %120 = vmatpush.xpose.msra.mxu0 %v44
    %121 = vmatmul.f32.gmra.mxu0 %v55
    %v122 = vpop.f32.mrf.mxu0
    %v123 = vadd.f32 %v103, %v122
    %124 = vdwg.mxu0
    %125 = vmatpush.xpose.msra.mxu0 0.0
    %126 = vmatpush.xpose.msra.mxu0 0.0
    %127 = vmatpush.xpose.msra.mxu0 0.0
    %128 = vmatpush.xpose.msra.mxu0 0.0
    %129 = vmatpush.xpose.msra.mxu0 0.0
    %130 = vmatpush.xpose.msra.mxu0 0.0
    %131 = vmatpush.xpose.msra.mxu0 0.0
    %132 = vmatpush.xpose.msra.mxu0 0.0
    %133 = vmatpush.xpose.msra.mxu0 0.0
    %134 = vmatpush.xpose.msra.mxu0 0.0
    %135 = vmatpush.xpose.msra.mxu0 0.0
    %136 = vmatpush.xpose.msra.mxu0 0.0
    %137 = vmatpush.xpose.msra.mxu0 0.0
    %138 = vmatpush.xpose.msra.mxu0 0.0
    %139 = vmatpush.xpose.msra.mxu0 0.0
    %140 = vmatpush.xpose.msra.mxu0 %v45
    %141 = vmatmul.f32.gmra.mxu0 %v56
    %v142 = vpop.f32.mrf.mxu0
    %v143 = vadd.f32 %v123, %v142
    %144 = vdwg.mxu0
    %145 = vmatpush.xpose.msra.mxu0 0.0
    %146 = vmatpush.xpose.msra.mxu0 0.0
    %147 = vmatpush.xpose.msra.mxu0 0.0
    %148 = vmatpush.xpose.msra.mxu0 0.0
    %149 = vmatpush.xpose.msra.mxu0 0.0
    %150 = vmatpush.xpose.msra.mxu0 0.0
    %151 = vmatpush.xpose.msra.mxu0 0.0
    %152 = vmatpush.xpose.msra.mxu0 0.0
    %153 = vmatpush.xpose.msra.mxu0 0.0
    %154 = vmatpush.xpose.msra.mxu0 0.0
    %155 = vmatpush.xpose.msra.mxu0 0.0
    %156 = vmatpush.xpose.msra.mxu0 0.0
    %157 = vmatpush.xpose.msra.mxu0 0.0
    %158 = vmatpush.xpose.msra.mxu0 0.0
    %159 = vmatpush.xpose.msra.mxu0 0.0
    %160 = vmatpush.xpose.msra.mxu0 %v46
    %161 = vmatmul.f32.gmra.mxu0 %v57
    %v162 = vpop.f32.mrf.mxu0
    %v163 = vadd.f32 %v143, %v162
    %164 = vdwg.mxu0
    %165 = vmatpush.xpose.msra.mxu0 0.0
    %166 = vmatpush.xpose.msra.mxu0 0.0
    %167 = vmatpush.xpose.msra.mxu0 0.0
    %168 = vmatpush.xpose.msra.mxu0 0.0
    %169 = vmatpush.xpose.msra.mxu0 0.0
    %170 = vmatpush.xpose.msra.mxu0 0.0
    %171 = vmatpush.xpose.msra.mxu0 0.0
    %172 = vmatpush.xpose.msra.mxu0 0.0
    %173 = vmatpush.xpose.msra.mxu0 0.0
    %174 = vmatpush.xpose.msra.mxu0 0.0
    %175 = vmatpush.xpose.msra.mxu0 0.0
    %176 = vmatpush.xpose.msra.mxu0 0.0
    %177 = vmatpush.xpose.msra.mxu0 0.0
    %178 = vmatpush.xpose.msra.mxu0 0.0
    %179 = vmatpush.xpose.msra.mxu0 0.0
    %180 = vmatpush.xpose.msra.mxu0 %v47
    %181 = vmatmul.f32.gmra.mxu0 %v58
    %v182 = vpop.f32.mrf.mxu0
    %v183 = vadd.f32 %v163, %v182
    %184 = vdwg.mxu0
    %vm185 = vcmask 58368
    %186 = vst.msk [vmem:[#allocation7] sm:$0x3] %vm185, %v183
    // Predicated region
    $region18: #{tpu_custom_call.1} parent=1 // pred_check
      _
    $region19: #{tpu_custom_call.1} parent=1 // pred_check_branch
      %188 = sbr.rel (0) target = $region21
    $region20: #{tpu_custom_call.1} parent=1 // pred_region
      %190 = vsyncadd [#allocation4], 0
      %s192 = sshll.u32 [#allocation7], 4
      %s193 = int_to_ptr.vmem [resolvable:$true] %s192
      %s194 = sshll.u32 %s2, 4
      %s195 = int_to_ptr.hbm [resolvable:$true] %s194
      %197 = dma.vmem_to_hbm [thread:$0]  %s193, 32, %s195, [#allocation4]
    $region21: #{tpu_custom_call.1} parent=1 // pred_fallthru
      _
    // Predicated region
    $region22: #{tpu_custom_call.1} parent=1 // pred_check
      _
    $region23: #{tpu_custom_call.1} parent=1 // pred_check_branch
      %199 = sbr.rel (0) target = $region25
    $region24: #{tpu_custom_call.1} parent=1 // pred_region
      %201 = dma.done [#allocation4], 32
    $region25: #{tpu_custom_call.1} parent=1 // pred_fallthru
      _
    %202 = vsyncpa [#allocation3], 1
    %203 = vsyncpa [#allocation6], 1
    %204 = vsyncpa [#allocation4], 1

</llo_original>
